<compile_context>
chip_gen: v5e
topology: v5e:2x2
jax: 0.10.0
libtpu: 0.0.40
codegen_flags: <defaults>
</compile_context>

<pallas_src>
import jax
import jax.numpy as jnp
from jax.experimental import pallas as pl
from jax.experimental.pallas import tpu as pltpu


def _patch_embed_kernel(x_ref, w_ref, bp_ref, cls_ref, o_ref):
    # x_ref  : (1, N, K)      bf16 patch matrix for this batch element
    # w_ref  : (K, E_pad)     bf16 conv weight (reshaped+transposed), grid-resident
    # bp_ref : (1, E_pad)     f32  conv bias + position encoding (pre-fused)
    # cls_ref: (1, E_pad)     f32  cls_token + position encoding (pre-fused)
    # o_ref  : (1, N+1, E_pad) f32 output rows for this batch element
    n = x_ref.shape[1]
    acc = jnp.dot(x_ref[0], w_ref[...], preferred_element_type=jnp.float32)  # (N, E_pad)
    o_ref[0, pl.ds(1, n), :] = acc + bp_ref[...]     # patch rows 1..N
    o_ref[0, pl.ds(0, 1), :] = cls_ref[...]          # cls row 0


def patch_embedding_forward(X, conv_w, conv_b, cls_token, pos_enc, patch_size):
    """X: (B, 3, H, W) float32 (NCHW, like PyTorch). Returns (B, num_patches+1, E) f32."""
    B, C, H, W = X.shape
    E = conv_w.shape[0]
    p = patch_size
    assert H % p == 0 and W % p == 0, "H/W must be divisible by patch_size"
    hp, wp = H // p, W // p
    N = hp * wp            # patches per image
    K = C * p * p          # contraction size

    # Lane-dense output: pad embed dim up to a multiple of 128 (no-op for E=768).
    E_pad = ((E + 127) // 128) * 128

    # --- glue: im2col in bf16 (dim splits are free views; one transpose pass) ---
    Xb = X.astype(jnp.bfloat16)
    patches = Xb.reshape(B, C, hp, p, wp, p)
    patches = jnp.transpose(patches, (0, 2, 4, 1, 3, 5)).reshape(B, N, K)   # (B, N, K) bf16

    # Conv weight (E, C, p, p) -> (K, E); bias+pos and cls+pos pre-fused (f32 epilogue).
    w_t = conv_w.reshape(E, K).T.astype(jnp.bfloat16)                       # (K, E)
    bp = (conv_b.reshape(1, E) + pos_enc.reshape(1, E)).astype(jnp.float32)
    cls = (cls_token.reshape(1, E) + pos_enc.reshape(1, E)).astype(jnp.float32)

    if E_pad != E:
        pad = ((0, 0), (0, E_pad - E))
        w_t = jnp.pad(w_t, pad)
        bp = jnp.pad(bp, pad)
        cls = jnp.pad(cls, pad)

    # --- Pallas kernel: per-image matmul + bias/pos epilogue + in-kernel cls row ---
    # Grid iterates over batch; weight/bias/cls index maps are constant so those
    # tiles stay resident across steps. For images with very large N, add a second
    # ("arbitrary") grid axis tiling N and guard the cls-row write with pl.when.
    out = pl.pallas_call(
        _patch_embed_kernel,
        out_shape=jax.ShapeDtypeStruct((B, N + 1, E_pad), jnp.float32),
        grid_spec=pltpu.PrefetchScalarGridSpec(
            num_scalar_prefetch=0,
            grid=(B,),
            in_specs=[
                pl.BlockSpec((1, N, K), lambda b: (b, 0, 0)),       # patches (per image)
                pl.BlockSpec((K, E_pad), lambda b: (0, 0)),         # weight (resident)
                pl.BlockSpec((1, E_pad), lambda b: (0, 0)),         # bias + pos
                pl.BlockSpec((1, E_pad), lambda b: (0, 0)),         # cls + pos
            ],
            out_specs=pl.BlockSpec((1, N + 1, E_pad), lambda b: (b, 0, 0)),
        ),
        compiler_params=pltpu.CompilerParams(
            dimension_semantics=("parallel",),   # megacore sharding on v7x; no-op on v5e/v6e
        ),
    )(patches, w_t, bp, cls)

    if E_pad != E:
        out = out[:, :, :E]
    return out


def _reference(X, conv_w, conv_b, cls_token, pos_enc, p):
    """Pure-JAX f32 reference of the PyTorch forward (eval mode)."""
    B, C, H, W = X.shape
    E = conv_w.shape[0]
    hp, wp = H // p, W // p
    N = hp * wp
    K = C * p * p
    patches = X.reshape(B, C, hp, p, wp, p)
    patches = jnp.transpose(patches, (0, 2, 4, 1, 3, 5)).reshape(B, N, K)
    proj = patches @ conv_w.reshape(E, K).T + conv_b.reshape(1, 1, E)
    token = jnp.broadcast_to(cls_token.reshape(1, 1, E), (B, 1, E))
    return jnp.concatenate([token, proj], axis=1) + pos_enc.reshape(1, 1, E)


if __name__ == "__main__":
    B, C, H, W = 2, 3, 16, 16
    patch_size = 4
    embed_dim = 32

    key = jax.random.PRNGKey(0)
    kx, kw, kb, kc, kp = jax.random.split(key, 5)

    X = jax.random.normal(kx, (B, C, H, W), dtype=jnp.float32)
    conv_w = jax.random.normal(kw, (embed_dim, C, patch_size, patch_size), dtype=jnp.float32) * 0.02
    conv_b = jax.random.normal(kb, (embed_dim,), dtype=jnp.float32) * 0.02
    cls_token = jax.random.normal(kc, (1, 1, embed_dim), dtype=jnp.float32)
    pos_enc = jax.random.normal(kp, (1, 1, embed_dim), dtype=jnp.float32)

    out = patch_embedding_forward(X, conv_w, conv_b, cls_token, pos_enc, patch_size)
    out = jax.block_until_ready(out)

    num_patches = (H // patch_size) * (W // patch_size)
    assert out.shape == (B, num_patches + 1, embed_dim), out.shape

    ref = _reference(X, conv_w, conv_b, cls_token, pos_enc, patch_size)
    max_err = float(jnp.max(jnp.abs(out - ref)))
    assert max_err < 2e-2, f"max abs error {max_err}"

    print("KERNEL_OK")
</pallas_src>

<mosaic_0001>
module attributes {stable_mosaic.version = 11 : i64} {
  func.func @_patch_embed_kernel(%arg0: i32, %arg1: memref<1x16x48xbf16, #tpu.memory_space<vmem>>, %arg2: memref<48x128xbf16, #tpu.memory_space<vmem>>, %arg3: memref<1x128xf32, #tpu.memory_space<vmem>>, %arg4: memref<1x128xf32, #tpu.memory_space<vmem>>, %arg5: memref<1x17x128xf32, #tpu.memory_space<vmem>>) attributes {dimension_semantics = [#tpu.dimension_semantics<parallel>], iteration_bounds = array<i64: 2>, scalar_prefetch = 0 : i64, scratch_operands = 0 : i64, tpu.core_type = #tpu.core_type<tc>, window_params = [{transform_indices = @transform_0, window_bounds = array<i64: 1, 16, 48>}, {pipeline_mode = #tpu.pipeline_mode<synchronous>, transform_indices = @transform_1, window_bounds = array<i64: 48, 128>}, {pipeline_mode = #tpu.pipeline_mode<synchronous>, transform_indices = @transform_2, window_bounds = array<i64: 1, 128>}, {pipeline_mode = #tpu.pipeline_mode<synchronous>, transform_indices = @transform_3, window_bounds = array<i64: 1, 128>}, {transform_indices = @transform_4, window_bounds = array<i64: 1, 17, 128>}]} {
    %c0 = arith.constant 0 : index
    %c0_0 = arith.constant 0 : index
    %c0_1 = arith.constant 0 : index
    %0 = vector.load %arg1[%c0, %c0_0, %c0_1] : memref<1x16x48xbf16, #tpu.memory_space<vmem>>, vector<1x16x48xbf16>
    %1 = vector.shape_cast %0 : vector<1x16x48xbf16> to vector<16x48xbf16>
    %c0_2 = arith.constant 0 : index
    %c0_3 = arith.constant 0 : index
    %2 = vector.load %arg2[%c0_2, %c0_3] : memref<48x128xbf16, #tpu.memory_space<vmem>>, vector<48x128xbf16>
    %cst = arith.constant dense<0.000000e+00> : vector<16x128xf32>
    %3 = tpu.matmul %1, %2, %cst {dimension_numbers = #tpu.dot_dimension_numbers<[1], [0], [0], [1], [0, 0, 1, 1], [], []>} : vector<16x48xbf16>, vector<48x128xbf16>, vector<16x128xf32> -> vector<16x128xf32>
    %c0_4 = arith.constant 0 : index
    %c0_5 = arith.constant 0 : index
    %4 = vector.load %arg3[%c0_4, %c0_5] : memref<1x128xf32, #tpu.memory_space<vmem>>, vector<1x128xf32>
    %5 = vector.broadcast %4 : vector<1x128xf32> to vector<16x128xf32>
    %6 = arith.addf %3, %5 : vector<16x128xf32>
    %c0_6 = arith.constant 0 : index
    %c1 = arith.constant 1 : index
    %c0_7 = arith.constant 0 : index
    %7 = vector.load %arg5[%c0_6, %c1, %c0_7] : memref<1x17x128xf32, #tpu.memory_space<vmem>>, vector<1x16x128xf32>
    %8 = vector.shape_cast %7 : vector<1x16x128xf32> to vector<16x128xf32>
    %9 = vector.shape_cast %6 : vector<16x128xf32> to vector<1x16x128xf32>
    tpu.vector_store %arg5[%c0_6, %c1, %c0_7], %9 {strides = array<i32>} : memref<1x17x128xf32, #tpu.memory_space<vmem>>, vector<1x16x128xf32>,
    %c0_8 = arith.constant 0 : index
    %c0_9 = arith.constant 0 : index
    %10 = vector.load %arg4[%c0_8, %c0_9] : memref<1x128xf32, #tpu.memory_space<vmem>>, vector<1x128xf32>
    %c0_10 = arith.constant 0 : index
    %c0_11 = arith.constant 0 : index
    %c0_12 = arith.constant 0 : index
    %11 = vector.load %arg5[%c0_10, %c0_11, %c0_12] : memref<1x17x128xf32, #tpu.memory_space<vmem>>, vector<1x1x128xf32>
    %12 = vector.shape_cast %11 : vector<1x1x128xf32> to vector<1x128xf32>
    %13 = vector.shape_cast %10 : vector<1x128xf32> to vector<1x1x128xf32>
    tpu.vector_store %arg5[%c0_10, %c0_11, %c0_12], %13 {strides = array<i32>} : memref<1x17x128xf32, #tpu.memory_space<vmem>>, vector<1x1x128xf32>,
    return
  }
  func.func @transform_0(%arg0: i32) -> (i32, i32, i32) {
    %c0_i32 = arith.constant 0 : i32
    %c0_i32_0 = arith.constant 0 : i32
    %c0_i32_1 = arith.constant 0 : i32
    return %arg0, %c0_i32, %c0_i32_0 : i32, i32, i32
  }
  func.func @transform_1(%arg0: i32) -> (i32, i32) {
    %c0_i32 = arith.constant 0 : i32
    %c0_i32_0 = arith.constant 0 : i32
    %c0_i32_1 = arith.constant 0 : i32
    return %c0_i32, %c0_i32_0 : i32, i32
  }
  func.func @transform_2(%arg0: i32) -> (i32, i32) {
    %c0_i32 = arith.constant 0 : i32
    %c0_i32_0 = arith.constant 0 : i32
    %c0_i32_1 = arith.constant 0 : i32
    return %c0_i32, %c0_i32_0 : i32, i32
  }
  func.func @transform_3(%arg0: i32) -> (i32, i32) {
    %c0_i32 = arith.constant 0 : i32
    %c0_i32_0 = arith.constant 0 : i32
    %c0_i32_1 = arith.constant 0 : i32
    return %c0_i32, %c0_i32_0 : i32, i32
  }
  func.func @transform_4(%arg0: i32) -> (i32, i32, i32) {
    %c0_i32 = arith.constant 0 : i32
    %c0_i32_0 = arith.constant 0 : i32
    %c0_i32_1 = arith.constant 0 : i32
    return %arg0, %c0_i32, %c0_i32_0 : i32, i32, i32
  }
}

</mosaic_0001>

<llo_original>
// kernel: tpu_custom_call.1
$region0: #{tpu_custom_call.1}
  #allocation0 [shape = 'u32[]', space=smem, size = 0x4, offset = 0x4, fixed_abs, tag = 'smem constant byte address 0x4 - core index']
  #allocation1 [shape = 'u32[72,128]{1,0:T(1,128)}', space=vmem, size = 0x9000, scoped, tag = 'internal scratch']
  %s0 = inlined_call_operand.hbm [shape: bf16[2,16,48], index: 0, kind: input, shape index: {}]
  %s1 = inlined_call_operand.hbm [shape: bf16[48,128], index: 1, kind: input, shape index: {}]
  %s2 = inlined_call_operand.vmem [shape: f32[1,128], index: 2, kind: input, shape index: {}]
  %s3 = inlined_call_operand.vmem [shape: f32[1,128], index: 3, kind: input, shape index: {}]
  %s4 = inlined_call_operand.vmem [shape: f32[2,17,128], index: 4, kind: output, shape index: {}]
  %s5 = sld [smem:[#allocation0]]
  $region57: #{tpu_custom_call.1} parent=0
    _
  %s7 = ssub.s32 1, %s5
  %s8 = scalar_select 0, %s7, %s5
  $region1: #{tpu_custom_call.1} parent=0
    #allocation2 [shape = 'u8[8192]{0}', space=vmem, size = 0x2000, scoped, tag = 'input window, operand 0']
    #allocation3 [shape = 's32[2]{0}', space=sflag, size = 0x8, scoped, tag = 'scoped memory for tpu_custom_call.1']
    #allocation4 [shape = 'u8[12288]{0}', space=vmem, size = 0x3000, scoped, tag = 'input window, operand 1, single buffered']
    #allocation5 [shape = 's32[1]{0}', space=sflag, size = 0x4, scoped, tag = 'scoped memory for tpu_custom_call.1']
    %9 = vsyncpa [#allocation3], 0
    %s10 = scalar_lea.sflag [#allocation3], 1
    %11 = vsyncpa %s10, 0
    %12 = vsyncpa [#allocation5], 0
    loop: start=0, step=1, limit=4
    $region2: #{tpu_custom_call.1} parent=1 // loop_pre_header
      _
    $region3: #{tpu_custom_call.1} parent=1 // loop_header
      %s14 = sphi 0, %s18
      %p15 = scmp.ge.s32.totalorder %s14, 4
      %s24 = sphi 0, %s26
      %s27 = sphi 0, %s24
      %s28 = sphi 0, %s27
      %s44 = sphi 0, %s28
      %s48 = sphi 0, %s48
      %s50 = sphi 0, %s48
      %s51 = sphi 0, %s50
      %s65 = sphi 0, %s51
      %s69 = sphi 0, %s69
      %s71 = sphi 0, %s69
      %s72 = sphi 0, %s71
      %s86 = sphi 0, %s72
      %s90 = sphi 0, %s90
      %s92 = sphi 0, %s90
      %s93 = sphi 0, %s92
      %s107 = sphi 0, %s93
      %s113 = sphi 0, %s115
      %s116 = sphi 0, %s113
      %s117 = sphi 0, %s116
      %s133 = sphi 0, %s117
    $region4: #{tpu_custom_call.1} parent=1 // loop_header_branch
      %17 = sbr.rel (%p15) target = $region8
    $region5: #{tpu_custom_call.1} parent=1 // loop_body
      %s19 = ssub.s32 %s14, 1
      %s20 = ssub.s32 %s14, 2
      %s21 = sadd.s32 %s14, 1
      %s22 = ssub.s32 %s14, %s21
      %p23 = scmp.eq.s32.totalorder %s22, 0
      %s25 = sadd.s32 %s24, 1
      %s26 = scalar_select %p23, %s24, %s25
      %p29 = pneg %p23
      %p30 = scmp.eq.s32.totalorder %s14, 1
      %p31 = por %p29, %p30
      %p32 = scmp.ne.s32.totalorder %s24, %s27
      %p33 = scmp.eq.s32.totalorder %s14, 0
      %p34 = por %p32, %p33
      %p35 = scmp.ne.s32.totalorder %s24, %s27
      %p36 = scmp.eq.s32.totalorder %s19, 1
      %p37 = por %p35, %p36
      %p38 = scmp.ne.s32.totalorder %s27, %s28
      %p39 = scmp.eq.s32.totalorder %s19, 0
      %p40 = por %p38, %p39
      %p41 = scmp.ne.s32.totalorder %s27, %s28
      %p42 = scmp.eq.s32.totalorder %s20, 1
      %p43 = por %p41, %p42
      %p45 = scmp.ne.s32.totalorder %s28, %s44
      %p46 = scmp.eq.s32.totalorder %s20, 0
      %p47 = por %p45, %p46
      %s49 = sadd.s32 %s48, 1
      %p52 = scmp.eq.s32.totalorder %s14, 1
      %p53 = scmp.ne.s32.totalorder %s48, %s50
      %p54 = scmp.eq.s32.totalorder %s14, 0
      %p55 = por %p53, %p54
      %p56 = scmp.ne.s32.totalorder %s48, %s50
      %p57 = scmp.eq.s32.totalorder %s19, 1
      %p58 = por %p56, %p57
      %p59 = scmp.ne.s32.totalorder %s50, %s51
      %p60 = scmp.eq.s32.totalorder %s19, 0
      %p61 = por %p59, %p60
      %p62 = scmp.ne.s32.totalorder %s50, %s51
      %p63 = scmp.eq.s32.totalorder %s20, 1
      %p64 = por %p62, %p63
      %p66 = scmp.ne.s32.totalorder %s51, %s65
      %p67 = scmp.eq.s32.totalorder %s20, 0
      %p68 = por %p66, %p67
      %s70 = sadd.s32 %s69, 1
      %p73 = scmp.eq.s32.totalorder %s14, 1
      %p74 = scmp.ne.s32.totalorder %s69, %s71
      %p75 = scmp.eq.s32.totalorder %s14, 0
      %p76 = por %p74, %p75
      %p77 = scmp.ne.s32.totalorder %s69, %s71
      %p78 = scmp.eq.s32.totalorder %s19, 1
      %p79 = por %p77, %p78
      %p80 = scmp.ne.s32.totalorder %s71, %s72
      %p81 = scmp.eq.s32.totalorder %s19, 0
      %p82 = por %p80, %p81
      %p83 = scmp.ne.s32.totalorder %s71, %s72
      %p84 = scmp.eq.s32.totalorder %s20, 1
      %p85 = por %p83, %p84
      %p87 = scmp.ne.s32.totalorder %s72, %s86
      %p88 = scmp.eq.s32.totalorder %s20, 0
      %p89 = por %p87, %p88
      %s91 = sadd.s32 %s90, 1
      %p94 = scmp.eq.s32.totalorder %s14, 1
      %p95 = scmp.ne.s32.totalorder %s90, %s92
      %p96 = scmp.eq.s32.totalorder %s14, 0
      %p97 = por %p95, %p96
      %p98 = scmp.ne.s32.totalorder %s90, %s92
      %p99 = scmp.eq.s32.totalorder %s19, 1
      %p100 = por %p98, %p99
      %p101 = scmp.ne.s32.totalorder %s92, %s93
      %p102 = scmp.eq.s32.totalorder %s19, 0
      %p103 = por %p101, %p102
      %p104 = scmp.ne.s32.totalorder %s92, %s93
      %p105 = scmp.eq.s32.totalorder %s20, 1
      %p106 = por %p104, %p105
      %p108 = scmp.ne.s32.totalorder %s93, %s107
      %p109 = scmp.eq.s32.totalorder %s20, 0
      %p110 = por %p108, %p109
      %s111 = ssub.s32 %s14, %s21
      %p112 = scmp.eq.s32.totalorder %s111, 0
      %s114 = sadd.s32 %s113, 1
      %s115 = scalar_select %p112, %s113, %s114
      %p118 = pneg %p112
      %p119 = scmp.eq.s32.totalorder %s14, 1
      %p120 = por %p118, %p119
      %p121 = scmp.ne.s32.totalorder %s113, %s116
      %p122 = scmp.eq.s32.totalorder %s14, 0
      %p123 = por %p121, %p122
      %p124 = scmp.ne.s32.totalorder %s113, %s116
      %p125 = scmp.eq.s32.totalorder %s19, 1
      %p126 = por %p124, %p125
      %p127 = scmp.ne.s32.totalorder %s116, %s117
      %p128 = scmp.eq.s32.totalorder %s19, 0
      %p129 = por %p127, %p128
      %p130 = scmp.ne.s32.totalorder %s116, %s117
      %p131 = scmp.eq.s32.totalorder %s20, 1
      %p132 = por %p130, %p131
      %p134 = scmp.ne.s32.totalorder %s117, %s133
      %p135 = scmp.eq.s32.totalorder %s20, 0
      %p136 = por %p134, %p135
      %p137 = scmp.le.s32.totalorder 1, %s14
      %p138 = scmp.lt.s32.totalorder %s14, 3
      %p139 = pnand %p137, %p138
      %p140 = pneg %p139
      // Predicated region
      $region9: #{tpu_custom_call.1} parent=5 // pred_check
        _
      $region10: #{tpu_custom_call.1} parent=5 // pred_check_branch
        %142 = sbr.rel (%p139) target = $region12
      $region11: #{tpu_custom_call.1} parent=5 // pred_region
        %s143 = ssub.s32 %s14, 1
        // Predicated region
        $region13: #{tpu_custom_call.1} parent=11 // pred_check
          %p144 = pneg %p61
        $region14: #{tpu_custom_call.1} parent=11 // pred_check_branch
          %146 = sbr.rel (%p144) target = $region16
        $region15: #{tpu_custom_call.1} parent=11 // pred_region
          %148 = vsyncadd [#allocation5], 0
          %s149 = sshll.u32 %s1, 4
          %s150 = int_to_ptr.hbm [resolvable:$true] %s149
          %s151 = sshll.u32 [#allocation4], 4
          %s152 = int_to_ptr.vmem [resolvable:$true] %s151
          %157 = dma.hbm_to_vmem [thread:$0]  %s150, 384, %s152, [#allocation5], 64, 64, 4
        $region16: #{tpu_custom_call.1} parent=11 // pred_fallthru
          _
        // Predicated region
        $region17: #{tpu_custom_call.1} parent=11 // pred_check
          %p158 = pneg %p82
        $region18: #{tpu_custom_call.1} parent=11 // pred_check_branch
          %160 = sbr.rel (%p158) target = $region20
        $region19: #{tpu_custom_call.1} parent=11 // pred_region
          _
        $region20: #{tpu_custom_call.1} parent=11 // pred_fallthru
          _
        // Predicated region
        $region21: #{tpu_custom_call.1} parent=11 // pred_check
          %p161 = pneg %p103
        $region22: #{tpu_custom_call.1} parent=11 // pred_check_branch
          %163 = sbr.rel (%p161) target = $region24
        $region23: #{tpu_custom_call.1} parent=11 // pred_region
          _
        $region24: #{tpu_custom_call.1} parent=11 // pred_fallthru
          _
      $region12: #{tpu_custom_call.1} parent=5 // pred_fallthru
        _
      %p164 = scmp.lt.s32.totalorder %s14, 2
      // Predicated region
      $region25: #{tpu_custom_call.1} parent=5 // pred_check
        %p165 = pneg %p164
      $region26: #{tpu_custom_call.1} parent=5 // pred_check_branch
        %167 = sbr.rel (%p165) target = $region28
      $region27: #{tpu_custom_call.1} parent=5 // pred_region
        // Predicated region
        $region29: #{tpu_custom_call.1} parent=27 // pred_check
          %p168 = pneg %p34
        $region30: #{tpu_custom_call.1} parent=27 // pred_check_branch
          %170 = sbr.rel (%p168) target = $region32
        $region31: #{tpu_custom_call.1} parent=27 // pred_region
          %s171 = sand.u32 %s24, 1
          %s172 = scalar_lea.sflag [#allocation3], %s171
          %s173 = sand.u32 %s24, 1
          %s174 = smul.addr %s173, 8
          %s175 = scalar_lea.vmem [#allocation2], %s174
          %177 = vsyncadd %s172, 0
          %s178 = smul.addr %s14, 2
          %s179 = smul.addr %s178, 4
          %s180 = scalar_lea.hbm %s0, %s179
          %s181 = sshll.u32 %s180, 4
          %s182 = int_to_ptr.hbm [resolvable:$true] %s181
          %s183 = sshll.u32 %s175, 4
          %s184 = int_to_ptr.vmem [resolvable:$true] %s183
          %189 = dma.hbm_to_vmem [thread:$0]  %s182, 128, %s184, %s172, 64, 64, 4
        $region32: #{tpu_custom_call.1} parent=27 // pred_fallthru
          _
      $region28: #{tpu_custom_call.1} parent=5 // pred_fallthru
        _
      %p190 = scmp.le.s32.totalorder 1, %s14
      %p191 = scmp.lt.s32.totalorder %s14, 3
      %p192 = pnand %p190, %p191
      %p193 = pneg %p192
      // Predicated region
      $region33: #{tpu_custom_call.1} parent=5 // pred_check
        _
      $region34: #{tpu_custom_call.1} parent=5 // pred_check_branch
        %195 = sbr.rel (%p192) target = $region36
      $region35: #{tpu_custom_call.1} parent=5 // pred_region
        %s196 = ssub.s32 %s14, 1
        %s197 = sand.u32 %s27, 1
        %s198 = scalar_lea.sflag [#allocation3], %s197
        %s199 = sand.u32 %s27, 1
        %s200 = smul.addr %s199, 8
        %s201 = scalar_lea.vmem [#allocation2], %s200
        // Predicated region
        $region37: #{tpu_custom_call.1} parent=35 // pred_check
          %p202 = pneg %p40
        $region38: #{tpu_custom_call.1} parent=35 // pred_check_branch
          %204 = sbr.rel (%p202) target = $region40
        $region39: #{tpu_custom_call.1} parent=35 // pred_region
          %206 = dma.done %s198, 128
        $region40: #{tpu_custom_call.1} parent=35 // pred_fallthru
          _
        // Predicated region
        $region41: #{tpu_custom_call.1} parent=35 // pred_check
          %p207 = pneg %p61
        $region42: #{tpu_custom_call.1} parent=35 // pred_check_branch
          %209 = sbr.rel (%p207) target = $region44
        $region43: #{tpu_custom_call.1} parent=35 // pred_region
          %211 = dma.done [#allocation5], 384
        $region44: #{tpu_custom_call.1} parent=35 // pred_fallthru
          _
        %s212 = sand.u32 %s27, 1
        %s213 = scalar_lea.sflag [#allocation3], %s212
        %s214 = sand.u32 %s27, 1
        %s215 = smul.addr %s214, 8
        %s216 = scalar_lea.vmem [#allocation2], %s215
        %p217 = pneg %p40
        %p218 = pneg %p37
        %p219 = pneg %p61
        %p220 = pneg %p58
        %p221 = pneg %p82
        %p222 = pneg %p79
        %p223 = pneg %p103
        %p224 = pneg %p100
        %p225 = pneg %p129
        %p226 = pneg %p126
        %p227 = scmp.lt.s32.totalorder %s19, 1
        %s228 = scalar_select %p227, %s19, 1
        %s229 = smul.addr %s228, 3
        %s230 = smul.addr %s229, 8
        %s231 = scalar_lea.vmem %s4, %s230
        %p232 = scmp.lt.s32.totalorder %s19, 1
        %s233 = scalar_select %p232, %s19, 1
        %s234 = smul.addr %s233, 3
        %s235 = smul.addr %s234, 8
        %s236 = scalar_lea.vmem %s4, %s235
        %v238 = vld [vmem:[%s201] sm:$0xf]
        %v239 = vld [vmem:[%s201 + $0x4] sm:$0xf]
        %v240 = vld [vmem:[#allocation4] sm:$0xf]
        %v241 = vld [vmem:[#allocation4 + $0x4] sm:$0xf]
        %v242 = vld [vmem:[#allocation4 + $0x8] sm:$0xf]
        %v243 = vld [vmem:[#allocation4 + $0xc] sm:$0xf]
        %v244 = vld [vmem:[#allocation4 + $0x10] sm:$0xf]
        %v245 = vld [vmem:[#allocation4 + $0x14] sm:$0xf]
        %v246 = vld [vmem:[%s2] sm:$0x1]
        %v248 = vperm.slane %v246, 0
        %v252 = vunpack.c.l.b16 %v238
        %v253 = vunpack.c.l.b16 %v239
        %v254 = vpack.c.b16 %v253, %v252
        %v261 = vunpack.c.l.b16 %v240
        %v262 = vunpack.c.l.b16 %v241
        %v263 = vunpack.c.l.b16 %v242
        %v264 = vunpack.c.l.b16 %v243
        %v265 = vunpack.c.l.b16 %v244
        %v266 = vunpack.c.l.b16 %v245
        %v267 = vpack.c.b16 %v262, %v261
        %v268 = vpack.c.b16 %v264, %v263
        %v269 = vpack.c.b16 %v266, %v265
        %vm273 = vcmask 392192
        %v275 = vsel %vm273, %v254, 0
        %277 = vmatpush.bf16.msra.mxu0 0
        %278 = vmatpush.bf16.msra.mxu0 0
        %279 = vmatpush.bf16.msra.mxu0 0
        %280 = vmatpush.bf16.msra.mxu0 0
        %281 = vmatpush.bf16.msra.mxu0 0
        %282 = vmatpush.bf16.msra.mxu0 %v269
        %283 = vmatpush.bf16.msra.mxu0 %v268
        %284 = vmatpush.bf16.msra.mxu0 %v267
        %285 = vmatmul.bf16.gmra.mxu0 %v275
        %v286 = vpop.f32.mrf.mxu0
        %v287 = vadd.f32 %v248, %v286
        %v288 = vpop.f32.mrf.mxu0
        %v289 = vadd.f32 %v248, %v288
        %290 = vdwg.mxu0
        %291 = vst [vmem:[%s236 + $0x1] sm:$0xff] %v287
        %292 = vst [vmem:[%s236 + $0x9] sm:$0xff] %v289
        %v293 = vld [vmem:[%s3] sm:$0x1]
        %294 = vst [vmem:[%s236] sm:$0x1] %v293
        %p295 = scmp.lt.s32.totalorder %s19, 1
        %s296 = scalar_select %p295, %s19, 1
        %s297 = smul.addr %s296, 3
        %s298 = smul.addr %s297, 8
        %s299 = scalar_lea.vmem %s4, %s298
        // Predicated region
        $region45: #{tpu_custom_call.1} parent=35 // pred_check
          %p300 = pneg %p126
        $region46: #{tpu_custom_call.1} parent=35 // pred_check_branch
          %302 = sbr.rel (%p300) target = $region48
        $region47: #{tpu_custom_call.1} parent=35 // pred_region
          _
        $region48: #{tpu_custom_call.1} parent=35 // pred_fallthru
          _
      $region36: #{tpu_custom_call.1} parent=5 // pred_fallthru
        _
      %p303 = scmp.le.s32.totalorder 2, %s14
      // Predicated region
      $region49: #{tpu_custom_call.1} parent=5 // pred_check
        %p304 = pneg %p303
      $region50: #{tpu_custom_call.1} parent=5 // pred_check_branch
        %306 = sbr.rel (%p304) target = $region52
      $region51: #{tpu_custom_call.1} parent=5 // pred_region
        %s307 = ssub.s32 %s14, 2
        // Predicated region
        $region53: #{tpu_custom_call.1} parent=51 // pred_check
          %p308 = pneg %p132
        $region54: #{tpu_custom_call.1} parent=51 // pred_check_branch
          %310 = sbr.rel (%p308) target = $region56
        $region55: #{tpu_custom_call.1} parent=51 // pred_region
          %p311 = scmp.lt.s32.totalorder %s20, 1
          %s312 = scalar_select %p311, %s20, 1
          %s313 = smul.addr %s312, 3
          %s314 = smul.addr %s313, 8
          %s315 = scalar_lea.vmem %s4, %s314
        $region56: #{tpu_custom_call.1} parent=51 // pred_fallthru
          _
      $region52: #{tpu_custom_call.1} parent=5 // pred_fallthru
        _
    $region6: #{tpu_custom_call.1} parent=1 // loop_footer
      %s18 = sadd.s32 1, %s14
    $region7: #{tpu_custom_call.1} parent=1 // loop_footer_branch
      %13 = sbr.rel target = $region3
    $region8: #{tpu_custom_call.1} parent=1 // loop_exit
      _
    %316 = vsyncpa [#allocation3], 1
    %s317 = scalar_lea.sflag [#allocation3], 1
    %318 = vsyncpa %s317, 1
    %319 = vsyncpa [#allocation5], 1

</llo_original>
